<compile_context>
chip_gen: v7x
topology: tpu7x:2x2x1
jax: 0.10.0
libtpu: 0.0.40
codegen_flags: <defaults>
</compile_context>

<pallas_src>
import functools

import jax
import jax.numpy as jnp
from jax.experimental import pallas as pl
from jax.experimental.pallas import tpu as pltpu

LANE = 128


def _round_up(x, m):
    return ((x + m - 1) // m) * m


def _vmem_limit_bytes():
    """Generation-aware VMEM budget (leave headroom for compiler scratch)."""
    try:
        cap = int(pltpu.get_tpu_info().vmem_capacity_bytes)
    except Exception:
        cap = 64 << 20  # conservative fallback (v7x-sized)
    return min((cap * 3) // 4, 100 << 20)   # ~48 MiB on v7x, ~96 MiB on v5e/v6e


def _softmax_lastdim(x):
    m = jnp.max(x, axis=-1, keepdims=True)
    e = jnp.exp(x - m)
    s = jnp.sum(e, axis=-1, keepdims=True)
    return e * pl.reciprocal(s, approx=True)   # divide goes to the EUP slot


# ----------------------------------------------------------------------------
# Path A: fused members — one (TB, H) @ (H, M*Cp) matmul per batch tile.
# (Also used for the activation=None fold-mean path with n_members == 1.)
# ----------------------------------------------------------------------------
def _fused_kernel(x_ref, wf_ref, bf_ref, o_ref, *, activation_fn, n_members,
                  c_pad, inv_m):
    logits = jnp.dot(x_ref[...], wf_ref[...],
                     preferred_element_type=jnp.float32)
    logits = logits + bf_ref[...]                      # f32 (1, M*Cp) row bcast

    if n_members == 1 and activation_fn is None:
        o_ref[...] = logits.astype(o_ref.dtype)
        return

    if activation_fn == "sigmoid":
        logits = jax.nn.sigmoid(logits)                # one pass over full tile

    acc = jnp.zeros((logits.shape[0], c_pad), dtype=jnp.float32)
    for m in range(n_members):                         # static unroll; slices are
        member = logits[:, m * c_pad:(m + 1) * c_pad]  # lane-aligned (Cp % 128 == 0)
        if activation_fn == "softmax":
            member = _softmax_lastdim(member)
        acc = acc + member
    o_ref[...] = (acc * inv_m).astype(o_ref.dtype)


# ----------------------------------------------------------------------------
# Path B: per-member grid loop with optional K (hidden-dim) tiling.
# ----------------------------------------------------------------------------
def _member_loop_kernel(x_ref, w_ref, b_ref, o_ref, macc_ref, eacc_ref, *,
                        activation_fn, inv_m):
    m = pl.program_id(1)
    k = pl.program_id(2)
    last_m = pl.num_programs(1) - 1
    last_k = pl.num_programs(2) - 1

    @pl.when((m == 0) & (k == 0))
    def _():
        eacc_ref[...] = jnp.zeros_like(eacc_ref)

    @pl.when(k == 0)
    def _():
        macc_ref[...] = jnp.zeros_like(macc_ref)

    macc_ref[...] += jnp.dot(x_ref[...], w_ref[0],
                             preferred_element_type=jnp.float32)

    @pl.when(k == last_k)
    def _():
        logits = macc_ref[...] + b_ref[...]            # f32 (1, Cp) row bcast
        if activation_fn == "sigmoid":
            logits = jax.nn.sigmoid(logits)
        elif activation_fn == "softmax":
            logits = _softmax_lastdim(logits)
        eacc_ref[...] += logits

    @pl.when((m == last_m) & (k == last_k))
    def _():
        o_ref[...] = (eacc_ref[...] * inv_m).astype(o_ref.dtype)


# ----------------------------------------------------------------------------
# Tiling heuristics
# ----------------------------------------------------------------------------
def _pick_batch_tile(B, per_row_bytes, budget):
    cands = (1024, 512, 256, 128, 64, 32, 16, 8)
    fitting = [c for c in cands if c <= B and c * per_row_bytes <= budget]
    # Prefer a divisor of B with >= 2 grid steps (keeps both v7x TCs busy).
    for c in fitting:
        if B % c == 0 and B // c >= 2:
            return c
    for c in fitting:
        if B % c == 0:
            return c
    if fitting:
        return fitting[0]          # non-divisible B: rely on boundary handling
    return B


def _pick_k_tile(H, c_pad, w_itemsize, vmem_limit):
    budget = vmem_limit // 4
    if 2 * H * c_pad * w_itemsize <= budget:
        return H
    for tk in (2048, 1024, 512, 256, 128):
        if H % tk == 0 and 2 * tk * c_pad * w_itemsize <= budget:
            return tk
    return H


# ----------------------------------------------------------------------------
# Host-side preparation (done ONCE, hoisted out of the per-call path).
# ----------------------------------------------------------------------------
def prepare_ensemble_params(weights, biases, activation_fn=None, *,
                            compute_dtype=jnp.bfloat16,
                            force_member_loop=False):
    """weights: (M, H, C) stacked member weights; biases: (M, C)."""
    weights = jnp.asarray(weights)
    biases = jnp.asarray(biases)
    M, H, C = weights.shape
    assert biases.shape == (M, C)

    if compute_dtype is None:
        compute_dtype = weights.dtype
    compute_dtype = jnp.dtype(compute_dtype)

    c_pad = _round_up(C, LANE)
    pad_bias_val = -1e30 if activation_fn == "softmax" else 0.0
    vmem_limit = _vmem_limit_bytes()

    fold_mean = (activation_fn is None) and (not force_member_loop)
    if fold_mean:
        # Mean of affine maps == affine map of the mean weights.
        w_eff = jnp.mean(weights.astype(jnp.float32), axis=0, keepdims=True)
        b_eff = jnp.mean(biases.astype(jnp.float32), axis=0, keepdims=True)
        m_eff, inv_m = 1, 1.0
    else:
        w_eff = weights.astype(jnp.float32)
        b_eff = biases.astype(jnp.float32)
        m_eff, inv_m = M, 1.0 / M

    # Lane-align the member stride / output width (pad C -> Cp).
    w_pad = jnp.zeros((m_eff, H, c_pad), jnp.float32).at[:, :, :C].set(w_eff)
    b_pad = jnp.full((m_eff, c_pad), pad_bias_val,
                     jnp.float32).at[:, :C].set(b_eff)

    fused_w_bytes = H * m_eff * c_pad * compute_dtype.itemsize
    # Account for double buffering: keep 2x fused weights <= half the budget.
    use_fused = (not force_member_loop) and (2 * fused_w_bytes <= vmem_limit // 2)

    params = dict(activation_fn=activation_fn, compute_dtype=compute_dtype,
                  m_eff=m_eff, inv_m=inv_m, H=H, C=C, c_pad=c_pad,
                  vmem_limit=vmem_limit,
                  mode="fused" if use_fused else "loop")
    if use_fused:
        # (m_eff, H, Cp) -> (H, m_eff*Cp), cast matmul weights to compute dtype.
        params["wf"] = jnp.transpose(w_pad, (1, 0, 2)).reshape(
            H, m_eff * c_pad).astype(compute_dtype)
        params["bf"] = b_pad.reshape(1, m_eff * c_pad)          # bias stays f32
    else:
        params["w"] = w_pad.astype(compute_dtype)               # (m_eff, H, Cp)
        params["b"] = b_pad                                     # (m_eff, Cp) f32
    return params


# ----------------------------------------------------------------------------
# Forward
# ----------------------------------------------------------------------------
def ensemble_apply(batch, params, *, batch_tile=None, k_tile=None):
    x = jnp.asarray(batch["x"])
    B, H = x.shape
    assert H == params["H"]
    out_dtype = x.dtype
    cdt = params["compute_dtype"]
    if x.dtype != cdt:
        x = x.astype(cdt)          # bf16 matmul inputs (f32 accumulation)

    C, c_pad = params["C"], params["c_pad"]
    m_eff, inv_m = params["m_eff"], params["inv_m"]
    act = params["activation_fn"]
    vmem_limit = params["vmem_limit"]

    if params["mode"] == "fused":
        wf, bf = params["wf"], params["bf"]
        wcols = m_eff * c_pad
        wf_bytes = wf.size * wf.dtype.itemsize
        budget = max(vmem_limit - 2 * wf_bytes - (4 << 20), 1 << 20)
        per_row = (2 * H * cdt.itemsize + 2 * c_pad * out_dtype.itemsize
                   + 2 * wcols * 4)
        TB = batch_tile or _pick_batch_tile(B, per_row, budget)
        n_bt = pl.cdiv(B, TB)

        kernel = functools.partial(_fused_kernel, activation_fn=act,
                                   n_members=m_eff, c_pad=c_pad, inv_m=inv_m)
        out = pl.pallas_call(
            kernel,
            out_shape=jax.ShapeDtypeStruct((B, c_pad), out_dtype),
            grid_spec=pltpu.PrefetchScalarGridSpec(
                num_scalar_prefetch=0,
                grid=(n_bt,),
                in_specs=[
                    pl.BlockSpec((TB, H), lambda i: (i, 0)),       # x tile
                    pl.BlockSpec((H, wcols), lambda i: (0, 0)),    # fused W
                    pl.BlockSpec((1, wcols), lambda i: (0, 0)),    # fused b
                ],
                out_specs=pl.BlockSpec((TB, c_pad), lambda i: (i, 0)),
            ),
            compiler_params=pltpu.CompilerParams(
                dimension_semantics=("parallel",),
                vmem_limit_bytes=vmem_limit,
            ),
        )(x, wf, bf)
    else:
        w, b = params["w"], params["b"]
        TK = k_tile or _pick_k_tile(H, c_pad, cdt.itemsize, vmem_limit)
        assert H % TK == 0, "k_tile must divide H"
        n_k = H // TK
        budget = max(vmem_limit - 2 * TK * c_pad * cdt.itemsize - (4 << 20),
                     1 << 20)
        per_row = (2 * TK * cdt.itemsize + 2 * c_pad * out_dtype.itemsize
                   + 2 * c_pad * 4)
        TB = batch_tile or _pick_batch_tile(B, per_row, budget)
        n_bt = pl.cdiv(B, TB)

        kernel = functools.partial(_member_loop_kernel, activation_fn=act,
                                   inv_m=inv_m)
        out = pl.pallas_call(
            kernel,
            out_shape=jax.ShapeDtypeStruct((B, c_pad), out_dtype),
            grid_spec=pltpu.PrefetchScalarGridSpec(
                num_scalar_prefetch=0,
                grid=(n_bt, m_eff, n_k),
                in_specs=[
                    pl.BlockSpec((TB, TK), lambda i, m, k: (i, k)),      # x
                    pl.BlockSpec((1, TK, c_pad), lambda i, m, k: (m, k, 0)),
                    pl.BlockSpec((1, c_pad), lambda i, m, k: (m, 0)),    # b_m
                ],
                out_specs=pl.BlockSpec((TB, c_pad), lambda i, m, k: (i, 0)),
                scratch_shapes=[pltpu.VMEM((TB, c_pad), jnp.float32),   # member acc
                                pltpu.VMEM((TB, c_pad), jnp.float32)],  # ensemble acc
            ),
            compiler_params=pltpu.CompilerParams(
                dimension_semantics=("parallel", "arbitrary", "arbitrary"),
                vmem_limit_bytes=vmem_limit,
            ),
        )(x, w, b)

    if c_pad != C:
        out = out[:, :C]
    return out


def ensemble_forward(batch, weights, biases, activation_fn=None, **kwargs):
    params = prepare_ensemble_params(weights, biases, activation_fn, **kwargs)
    return ensemble_apply(batch, params)


# ----------------------------------------------------------------------------
# Reference + test
# ----------------------------------------------------------------------------
def _reference(x, weights, biases, activation_fn=None):
    outs = []
    for m in range(weights.shape[0]):
        o = x @ weights[m] + biases[m]
        if activation_fn == "sigmoid":
            o = jax.nn.sigmoid(o)
        elif activation_fn == "softmax":
            o = jax.nn.softmax(o, axis=1)
        outs.append(o)
    return jnp.stack(outs, axis=0).mean(axis=0)


if __name__ == "__main__":
    key = jax.random.PRNGKey(0)

    # TODO(synk): member models are synthetic linear heads; arbitrary nn.Module
    # members from the original ModuleList have no generic Pallas equivalent.
    #       (B,   H,   C,   M, compute_dtype, force_member_loop, k_tile)
    configs = [
        (8,   32,  16,  3, jnp.float32,  False, None),  # fused + fold-mean, padded C
        (8,   32,  16,  3, jnp.float32,  True,  None),  # member loop, TK = H
        (256, 128, 128, 2, jnp.bfloat16, False, None),  # fused, aligned C, 2 batch tiles
        (128, 256, 16,  2, jnp.bfloat16, True,  128),   # member loop with K tiling
    ]

    ok = True
    for (B, H, C, M, cdt, force_loop, ktile) in configs:
        kx, kw, kb = jax.random.split(jax.random.fold_in(key, B * 131 + H), 3)
        x = jax.random.normal(kx, (B, H), dtype=jnp.float32)
        weights = jax.random.normal(kw, (M, H, C), dtype=jnp.float32) * 0.1
        biases = jax.random.normal(kb, (M, C), dtype=jnp.float32) * 0.1
        batch = {"x": x}

        for act in (None, "sigmoid", "softmax"):
            params = prepare_ensemble_params(weights, biases, act,
                                             compute_dtype=cdt,
                                             force_member_loop=force_loop)
            out = ensemble_apply(batch, params, k_tile=ktile)
            out = jax.block_until_ready(out)
            ref = _reference(x, weights, biases, activation_fn=act)

            if cdt == jnp.bfloat16:
                tol = 3e-2                 # bf16 matmul inputs (f32 accumulation)
            elif act == "softmax":
                tol = 2e-2                 # approx-reciprocal (EUP) softmax
            else:
                tol = 1e-5
            if not jnp.allclose(out.astype(jnp.float32), ref, atol=tol, rtol=tol):
                ok = False
                err = float(jnp.max(jnp.abs(out.astype(jnp.float32) - ref)))
                print("MISMATCH", (B, H, C, M), act, "loop" if force_loop else "fused", err)

    if ok:
        print("KERNEL_OK")
</pallas_src>

<mosaic_0001>
module attributes {stable_mosaic.version = 11 : i64} {
  func.func @_fused_kernel(%arg0: i32, %arg1: memref<8x32xf32, #tpu.memory_space<vmem>>, %arg2: memref<32x128xf32, #tpu.memory_space<vmem>>, %arg3: memref<1x128xf32, #tpu.memory_space<vmem>>, %arg4: memref<8x128xf32, #tpu.memory_space<vmem>>) attributes {dimension_semantics = [#tpu.dimension_semantics<parallel>], iteration_bounds = array<i64: 1>, scalar_prefetch = 0 : i64, scratch_operands = 0 : i64, tpu.core_type = #tpu.core_type<tc>, window_params = [{transform_indices = @transform_0, window_bounds = array<i64: 8, 32>}, {pipeline_mode = #tpu.pipeline_mode<synchronous>, transform_indices = @transform_1, window_bounds = array<i64: 32, 128>}, {pipeline_mode = #tpu.pipeline_mode<synchronous>, transform_indices = @transform_2, window_bounds = array<i64: 1, 128>}, {transform_indices = @transform_3, window_bounds = array<i64: 8, 128>}]} {
    %c0 = arith.constant 0 : index
    %c0_0 = arith.constant 0 : index
    %0 = vector.load %arg1[%c0, %c0_0] : memref<8x32xf32, #tpu.memory_space<vmem>>, vector<8x32xf32>
    %c0_1 = arith.constant 0 : index
    %c0_2 = arith.constant 0 : index
    %1 = vector.load %arg2[%c0_1, %c0_2] : memref<32x128xf32, #tpu.memory_space<vmem>>, vector<32x128xf32>
    %cst = arith.constant dense<0.000000e+00> : vector<8x128xf32>
    %2 = tpu.matmul %0, %1, %cst {dimension_numbers = #tpu.dot_dimension_numbers<[1], [0], [0], [1], [0, 0, 1, 1], [], []>} : vector<8x32xf32>, vector<32x128xf32>, vector<8x128xf32> -> vector<8x128xf32>
    %c0_3 = arith.constant 0 : index
    %c0_4 = arith.constant 0 : index
    %3 = vector.load %arg3[%c0_3, %c0_4] : memref<1x128xf32, #tpu.memory_space<vmem>>, vector<1x128xf32>
    %4 = vector.broadcast %3 : vector<1x128xf32> to vector<8x128xf32>
    %5 = arith.addf %2, %4 : vector<8x128xf32>
    %c0_5 = arith.constant 0 : index
    %c0_6 = arith.constant 0 : index
    %6 = vector.load %arg4[%c0_5, %c0_6] : memref<8x128xf32, #tpu.memory_space<vmem>>, vector<8x128xf32>
    tpu.vector_store %arg4[%c0_5, %c0_6], %5 {strides = array<i32>} : memref<8x128xf32, #tpu.memory_space<vmem>>, vector<8x128xf32>,
    return
  }
  func.func @transform_0(%arg0: i32) -> (i32, i32) {
    %c0_i32 = arith.constant 0 : i32
    %c0_i32_0 = arith.constant 0 : i32
    return %arg0, %c0_i32 : i32, i32
  }
  func.func @transform_1(%arg0: i32) -> (i32, i32) {
    %c0_i32 = arith.constant 0 : i32
    %c0_i32_0 = arith.constant 0 : i32
    %c0_i32_1 = arith.constant 0 : i32
    return %c0_i32, %c0_i32_0 : i32, i32
  }
  func.func @transform_2(%arg0: i32) -> (i32, i32) {
    %c0_i32 = arith.constant 0 : i32
    %c0_i32_0 = arith.constant 0 : i32
    %c0_i32_1 = arith.constant 0 : i32
    return %c0_i32, %c0_i32_0 : i32, i32
  }
  func.func @transform_3(%arg0: i32) -> (i32, i32) {
    %c0_i32 = arith.constant 0 : i32
    %c0_i32_0 = arith.constant 0 : i32
    return %arg0, %c0_i32 : i32, i32
  }
}

</mosaic_0001>

<llo_original>
// kernel: tpu_custom_call.1
$region0: #{tpu_custom_call.1}
  #allocation0 [shape = 'u32[]', space=smem, size = 0x4, offset = 0x4, fixed_abs, tag = 'smem constant byte address 0x4 - core index']
  #allocation1 [shape = 'u32[144,128]{1,0:T(1,128)}', space=vmem, size = 0x12000, scoped, tag = 'internal scratch']
  %s0 = inlined_call_operand.hbm [shape: f32[8,32], index: 0, kind: input, shape index: {}]
  %s1 = inlined_call_operand.hbm [shape: f32[32,128], index: 1, kind: input, shape index: {}]
  %s2 = inlined_call_operand.vmem [shape: f32[1,128], index: 2, kind: input, shape index: {}]
  %s3 = inlined_call_operand.hbm [shape: f32[8,128], index: 3, kind: output, shape index: {}]
  %s4 = sld [smem:[#allocation0]]
  $region30: #{tpu_custom_call.1} parent=0
    _
  %s6 = ssub.s32 1, %s4
  %s7 = scalar_select 0, %s6, %s4
  $region1: #{tpu_custom_call.1} parent=0
    #allocation2 [shape = 'u8[4096]{0}', space=vmem, size = 0x1000, scoped, tag = 'input window, operand 0, single buffered']
    #allocation3 [shape = 's32[1]{0}', space=sflag, size = 0x4, scoped, tag = 'scoped memory for tpu_custom_call.1']
    #allocation4 [shape = 's32[1]{0}', space=sflag, size = 0x4, scoped, tag = 'scoped memory for tpu_custom_call.1']
    #allocation5 [shape = 'u8[16384]{0}', space=vmem, size = 0x4000, scoped, tag = 'input window, operand 1, single buffered']
    #allocation6 [shape = 's32[1]{0}', space=sflag, size = 0x4, scoped, tag = 'scoped memory for tpu_custom_call.1']
    #allocation7 [shape = 'u8[4096]{0}', space=vmem, size = 0x1000, scoped, tag = 'output window, operand 0, single buffered']
    %8 = vsyncpa [#allocation3], 0
    %9 = vsyncpa [#allocation6], 0
    %10 = vsyncpa [#allocation4], 0
    // Predicated region
    $region2: #{tpu_custom_call.1} parent=1 // pred_check
      _
    $region3: #{tpu_custom_call.1} parent=1 // pred_check_branch
      %12 = sbr.rel (0) target = $region5
    $region4: #{tpu_custom_call.1} parent=1 // pred_region
      %s14 = ssub.s32 128, 128
      %15 = vsyncadd [#allocation3], %s14
      %s17 = sshll.u32 [#allocation2], 4
      %s18 = int_to_ptr.vmem [resolvable:$true] %s17
      %20 = dma.hbm_to_vmem [thread:$0]  %s0, 128, %s18, [#allocation3]
    $region5: #{tpu_custom_call.1} parent=1 // pred_fallthru
      _
    // Predicated region
    $region6: #{tpu_custom_call.1} parent=1 // pred_check
      _
    $region7: #{tpu_custom_call.1} parent=1 // pred_check_branch
      %22 = sbr.rel (0) target = $region9
    $region8: #{tpu_custom_call.1} parent=1 // pred_region
      %s24 = ssub.s32 512, 512
      %25 = vsyncadd [#allocation6], %s24
      %s26 = sshll.u32 [#allocation5], 4
      %s27 = int_to_ptr.vmem [resolvable:$true] %s26
      %32 = dma.hbm_to_vmem [thread:$0]  %s1, 512, %s27, [#allocation6], 128, 128, 8
    $region9: #{tpu_custom_call.1} parent=1 // pred_fallthru
      _
    // Predicated region
    $region10: #{tpu_custom_call.1} parent=1 // pred_check
      _
    $region11: #{tpu_custom_call.1} parent=1 // pred_check_branch
      %34 = sbr.rel (0) target = $region13
    $region12: #{tpu_custom_call.1} parent=1 // pred_region
      _
    $region13: #{tpu_custom_call.1} parent=1 // pred_fallthru
      _
    // Predicated region
    $region14: #{tpu_custom_call.1} parent=1 // pred_check
      _
    $region15: #{tpu_custom_call.1} parent=1 // pred_check_branch
      %36 = sbr.rel (0) target = $region17
    $region16: #{tpu_custom_call.1} parent=1 // pred_region
      %37 = dma.done [#allocation3], 128
    $region17: #{tpu_custom_call.1} parent=1 // pred_fallthru
      _
    // Predicated region
    $region18: #{tpu_custom_call.1} parent=1 // pred_check
      _
    $region19: #{tpu_custom_call.1} parent=1 // pred_check_branch
      %39 = sbr.rel (0) target = $region21
    $region20: #{tpu_custom_call.1} parent=1 // pred_region
      %40 = dma.done [#allocation6], 512
    $region21: #{tpu_custom_call.1} parent=1 // pred_fallthru
      _
    %v41 = vld [vmem:[#allocation2] sm:$0xff]
    %v42 = vld [vmem:[#allocation5] sm:$0xff]
    %v43 = vld [vmem:[#allocation5 + $0x8] sm:$0xff]
    %v44 = vld [vmem:[#allocation5 + $0x10] sm:$0xff]
    %v45 = vld [vmem:[#allocation5 + $0x18] sm:$0xff]
    %v46 = vld [vmem:[%s2] sm:$0x1]
    %v48 = vlaneseq
    %v49 = vshrl.u32 %v48, 7
    %v50 = vsub.s32 0, %v49
    %v51 = vrot.slane %v46, %v50
    %vm53 = vcmask 261120
    %v55 = vsel %vm53, %v41, 0
    %57 = vmatprep.subr.mxu0 0.0
    %58 = vmatpush1.msra.mxu0 %v42
    %59 = vmatprep.subr.mxu0 0.0
    %60 = vmatpush1.msra.mxu0 %v43
    %61 = vmatprep.subr.mxu0 0.0
    %62 = vmatpush1.msra.mxu0 %v44
    %63 = vmatprep.subr.mxu0 0.0
    %64 = vmatpush1.msra.mxu0 %v45
    %65 = vmatprep.subr.mxu0 0.0
    %66 = vmatpush1.msra.mxu0 0.0
    %67 = vmatprep.subr.mxu0 0.0
    %68 = vmatpush1.msra.mxu0 0.0
    %69 = vmatprep.subr.mxu0 0.0
    %70 = vmatpush1.msra.mxu0 0.0
    %71 = vmatprep.subr.mxu0 0.0
    %72 = vmatpush1.msra.mxu0 0.0
    %73 = vmatprep.subr.mxu0 0.0
    %74 = vmatpush1.msra.mxu0 0.0
    %75 = vmatprep.subr.mxu0 0.0
    %76 = vmatpush1.msra.mxu0 0.0
    %77 = vmatprep.subr.mxu0 0.0
    %78 = vmatpush1.msra.mxu0 0.0
    %79 = vmatprep.subr.mxu0 0.0
    %80 = vmatpush1.msra.mxu0 0.0
    %81 = vmatprep.subr.mxu0 0.0
    %82 = vmatpush1.msra.mxu0 0.0
    %83 = vmatprep.subr.mxu0 0.0
    %84 = vmatpush1.msra.mxu0 0.0
    %85 = vmatprep.subr.mxu0 0.0
    %86 = vmatpush1.msra.mxu0 0.0
    %87 = vmatprep.subr.mxu0 0.0
    %88 = vmatpush1.msra.mxu0 0.0
    %89 = vmatprep.subr.mxu0 0.0
    %90 = vmatpush1.msra.mxu0 0.0
    %91 = vmatprep.subr.mxu0 0.0
    %92 = vmatpush1.msra.mxu0 0.0
    %93 = vmatprep.subr.mxu0 0.0
    %94 = vmatpush1.msra.mxu0 0.0
    %95 = vmatprep.subr.mxu0 0.0
    %96 = vmatpush1.msra.mxu0 0.0
    %97 = vmatprep.subr.mxu0 0.0
    %98 = vmatpush1.msra.mxu0 0.0
    %99 = vmatprep.subr.mxu0 0.0
    %100 = vmatpush1.msra.mxu0 0.0
    %101 = vmatprep.subr.mxu0 0.0
    %102 = vmatpush1.msra.mxu0 0.0
    %103 = vmatprep.subr.mxu0 0.0
    %104 = vmatpush1.msra.mxu0 0.0
    %105 = vmatprep.subr.mxu0 0.0
    %106 = vmatpush1.msra.mxu0 0.0
    %107 = vmatprep.subr.mxu0 0.0
    %108 = vmatpush1.msra.mxu0 0.0
    %109 = vmatprep.subr.mxu0 0.0
    %110 = vmatpush1.msra.mxu0 0.0
    %111 = vmatprep.subr.mxu0 0.0
    %112 = vmatpush1.msra.mxu0 0.0
    %113 = vmatprep.subr.mxu0 0.0
    %114 = vmatpush1.msra.mxu0 0.0
    %115 = vmatprep.subr.mxu0 0.0
    %116 = vmatpush1.msra.mxu0 0.0
    %117 = vmatprep.subr.mxu0 0.0
    %118 = vmatpush1.msra.mxu0 0.0
    %119 = vmatprep.subr.mxu0 0.0
    %120 = vmatpush1.msra.mxu0 0.0
    %121 = vmatprep.mubr.f32.mxu0 0.0
    %122 = vmatmul.mubr.f32.gmra.mrb[0].mxu0 %v55
    %v123 = vpop.f32.mrb[0].mxu0
    %v124 = vadd.f32 %v51, %v123
    %v125 = vpop.f32.mrb[0].mxu0
    %126 = vdwg.mxu0
    %127 = vst [vmem:[#allocation7] sm:$0xff] %v124
    // Predicated region
    $region22: #{tpu_custom_call.1} parent=1 // pred_check
      _
    $region23: #{tpu_custom_call.1} parent=1 // pred_check_branch
      %129 = sbr.rel (0) target = $region25
    $region24: #{tpu_custom_call.1} parent=1 // pred_region
      %s131 = ssub.s32 128, 128
      %132 = vsyncadd [#allocation4], %s131
      %s134 = sshll.u32 [#allocation7], 4
      %s135 = int_to_ptr.vmem [resolvable:$true] %s134
      %137 = dma.vmem_to_hbm [thread:$0]  %s135, 128, %s3, [#allocation4]
    $region25: #{tpu_custom_call.1} parent=1 // pred_fallthru
      _
    // Predicated region
    $region26: #{tpu_custom_call.1} parent=1 // pred_check
      _
    $region27: #{tpu_custom_call.1} parent=1 // pred_check_branch
      %139 = sbr.rel (0) target = $region29
    $region28: #{tpu_custom_call.1} parent=1 // pred_region
      %140 = dma.done [#allocation4], 128
    $region29: #{tpu_custom_call.1} parent=1 // pred_fallthru
      _
    %141 = vsyncpa [#allocation3], 1
    %142 = vsyncpa [#allocation6], 1
    %143 = vsyncpa [#allocation4], 1

</llo_original>
